<compile_context>
chip_gen: v6e
topology: v6e:2x2x1
jax: 0.10.0
libtpu: 0.0.40
codegen_flags: <defaults>
</compile_context>

<pallas_src>
import functools

import jax
import jax.numpy as jnp
from jax.experimental import pallas as pl
from jax.experimental.pallas import tpu as pltpu


# ---------------------------------------------------------------------------
# VMEM budgeting
# ---------------------------------------------------------------------------
def _vmem_plan(block_bytes=None, vmem_limit_bytes=None):
    """Derive (block_bytes, vmem_limit_bytes) from the chip's VMEM capacity."""
    cap = 64 * 1024 * 1024  # conservative fallback: v7x per-TC VMEM
    try:
        info = pltpu.get_tpu_info()
        cap = int(getattr(info, "vmem_capacity_bytes", cap)) or cap
    except Exception:
        pass
    limit = int(vmem_limit_bytes) if vmem_limit_bytes is not None else (cap * 3) // 4
    blk = int(block_bytes) if block_bytes is not None else max(limit // 8, 1 << 19)
    return blk, limit


def _largest_divisor(n, fits):
    best = 1
    for d in range(1, n + 1):
        if n % d == 0 and fits(d):
            best = d
    return best


def _plan_4d_tiles(N, C, HW, itemsize, block_bytes):
    """Pick (tn, tw): leading-batch tile and lane-dense spatial tile."""
    if N * C * HW * itemsize <= block_bytes:
        return N, HW  # whole tensor in a single block -> resident, 1 HBM read
    if HW % 128 == 0:
        # Lane-dense spatial tiles (multiple of 128), full batch per block.
        best = 0
        for k in range(1, HW // 128 + 1):
            tw = 128 * k
            if HW % tw == 0 and N * C * tw * itemsize <= block_bytes:
                best = tw
        if best:
            return N, best
        # Even a 128-wide spatial tile with the full batch is too big: also
        # split the (unconstrained) leading batch axis.
        tn = _largest_divisor(N, lambda d: d * C * 128 * itemsize <= block_bytes)
        return tn, 128
    # Ragged spatial extent: keep the full HW on the lane axis (allowed because
    # it equals the full array dim) and tile the leading batch axis instead of
    # emitting one oversized block.
    tn = _largest_divisor(N, lambda d: d * C * HW * itemsize <= block_bytes)
    return tn, HW


def _plan_2d_tiles(B, F, itemsize, block_bytes):
    """Pick tb (batch tile, sublane axis) for the fully-connected path."""
    if B * F * itemsize <= block_bytes:
        return B
    best = 0
    for d in range(8, B, 8):  # multiple-of-8 divisors (sublane constraint)
        if B % d == 0 and d * F * itemsize <= block_bytes:
            best = d
    if best:
        return best
    if B % 8 == 0:
        return 8
    # TODO(synk): masked sublane tiling for B not a multiple of 8.
    return B


# ---------------------------------------------------------------------------
# Kernels
# ---------------------------------------------------------------------------
def _bn4d_kernel(x_ref, gamma_ref, beta_ref, mm_ref, mv_ref,
                 y_ref, new_mm_ref, new_mv_ref,
                 shift_ref, s1_ref, s2_ref, scale_ref, bias_ref,
                 *, eps, momentum, m_total):
    phase = pl.program_id(0)
    bt = pl.program_id(1)
    wt = pl.program_id(2)
    nb = pl.num_programs(1)
    nw = pl.num_programs(2)
    is_first = jnp.logical_and(bt == 0, wt == 0)
    is_last = jnp.logical_and(bt == nb - 1, wt == nw - 1)

    @pl.when(phase == 0)
    def _stats_phase():
        x = x_ref[...].astype(jnp.float32)  # (tn, C, tw)

        @pl.when(is_first)
        def _init():
            # Per-channel shift from the first tile (numerical robustness of
            # the single-pass shifted-sum variance).
            cnt = x.shape[0] * x.shape[2]
            tile_sum = jnp.sum(jnp.sum(x, axis=2, keepdims=True),
                               axis=0, keepdims=True)
            shift_ref[...] = tile_sum * (1.0 / cnt)
            s1_ref[...] = jnp.zeros_like(s1_ref)
            s2_ref[...] = jnp.zeros_like(s2_ref)

        xs = x - shift_ref[...]
        s1_ref[...] += jnp.sum(jnp.sum(xs, axis=2, keepdims=True),
                               axis=0, keepdims=True)
        s2_ref[...] += jnp.sum(jnp.sum(xs * xs, axis=2, keepdims=True),
                               axis=0, keepdims=True)

        @pl.when(is_last)
        def _finalize():
            inv_m = 1.0 / m_total
            d_mean = s1_ref[...] * inv_m  # E[x - shift]
            mean = shift_ref[...] + d_mean
            var = jnp.maximum(s2_ref[...] * inv_m - d_mean * d_mean, 0.0)
            inv_std = jax.lax.rsqrt(var + eps)
            g = gamma_ref[...].astype(jnp.float32)
            b = beta_ref[...].astype(jnp.float32)
            scale_ref[...] = g * inv_std
            bias_ref[...] = b - mean * g * inv_std
            # d2l convention: new = momentum*old + (1-momentum)*batch_stat.
            new_mm_ref[...] = (momentum * mm_ref[...].astype(jnp.float32)
                               + (1.0 - momentum) * mean).astype(new_mm_ref.dtype)
            new_mv_ref[...] = (momentum * mv_ref[...].astype(jnp.float32)
                               + (1.0 - momentum) * var).astype(new_mv_ref.dtype)

    @pl.when(phase == 1)
    def _normalize_phase():
        x = x_ref[...].astype(jnp.float32)
        y_ref[...] = (x * scale_ref[...] + bias_ref[...]).astype(y_ref.dtype)


def _bn2d_kernel(x_ref, gamma_ref, beta_ref, mm_ref, mv_ref,
                 y_ref, new_mm_ref, new_mv_ref,
                 shift_ref, s1_ref, s2_ref, scale_ref, bias_ref,
                 *, eps, momentum, m_total):
    phase = pl.program_id(0)
    bt = pl.program_id(1)
    nb = pl.num_programs(1)

    @pl.when(phase == 0)
    def _stats_phase():
        x = x_ref[...].astype(jnp.float32)  # (tb, F) — features on lanes

        @pl.when(bt == 0)
        def _init():
            shift_ref[...] = jnp.sum(x, axis=0, keepdims=True) * (1.0 / x.shape[0])
            s1_ref[...] = jnp.zeros_like(s1_ref)
            s2_ref[...] = jnp.zeros_like(s2_ref)

        xs = x - shift_ref[...]
        s1_ref[...] += jnp.sum(xs, axis=0, keepdims=True)
        s2_ref[...] += jnp.sum(xs * xs, axis=0, keepdims=True)

        @pl.when(bt == nb - 1)
        def _finalize():
            inv_m = 1.0 / m_total
            d_mean = s1_ref[...] * inv_m
            mean = shift_ref[...] + d_mean
            var = jnp.maximum(s2_ref[...] * inv_m - d_mean * d_mean, 0.0)
            inv_std = jax.lax.rsqrt(var + eps)
            g = gamma_ref[...].astype(jnp.float32)
            b = beta_ref[...].astype(jnp.float32)
            scale_ref[...] = g * inv_std
            bias_ref[...] = b - mean * g * inv_std
            new_mm_ref[...] = (momentum * mm_ref[...].astype(jnp.float32)
                               + (1.0 - momentum) * mean).astype(new_mm_ref.dtype)
            new_mv_ref[...] = (momentum * mv_ref[...].astype(jnp.float32)
                               + (1.0 - momentum) * var).astype(new_mv_ref.dtype)

    @pl.when(phase == 1)
    def _normalize_phase():
        x = x_ref[...].astype(jnp.float32)
        y_ref[...] = (x * scale_ref[...] + bias_ref[...]).astype(y_ref.dtype)


# ---------------------------------------------------------------------------
# Wrappers
# ---------------------------------------------------------------------------
def _batch_norm_4d(x, gamma, beta, mm, mv, eps, momentum, block_bytes, vmem_limit):
    N, C, H, W = x.shape
    HW = H * W
    itemsize = jnp.dtype(x.dtype).itemsize

    # Free reshapes only — no transpose, no extra HBM round trips.
    x3 = x.reshape(N, C, HW)
    g3 = gamma.reshape(1, C, 1)
    b3 = beta.reshape(1, C, 1)
    mm3 = mm.reshape(1, C, 1)
    mv3 = mv.reshape(1, C, 1)

    tn, tw = _plan_4d_tiles(N, C, HW, itemsize, block_bytes)
    nt_n, nt_w = N // tn, HW // tw
    n_tiles = nt_n * nt_w

    kernel = functools.partial(_bn4d_kernel, eps=float(eps),
                               momentum=float(momentum), m_total=float(N * HW))

    x_spec = pl.BlockSpec((tn, C, tw), lambda p, i, t: (i, 0, t))
    # Pin the y block to index 0 during phase 0 so the single HBM writeback of
    # each y block always carries phase-1 (normalized) data.
    y_spec = pl.BlockSpec((tn, C, tw), lambda p, i, t: (p * i, 0, p * t))
    par_spec = pl.BlockSpec((1, C, 1), lambda p, i, t: (0, 0, 0))

    reads = 1 if n_tiles == 1 else 2  # resident single-block path reads x once
    cost = pl.CostEstimate(
        flops=int(10 * x3.size),
        transcendentals=int(2 * C),
        bytes_accessed=int((reads + 1) * x3.size * itemsize),
    )

    y3, new_mm3, new_mv3 = pl.pallas_call(
        kernel,
        out_shape=(
            jax.ShapeDtypeStruct((N, C, HW), x.dtype),
            jax.ShapeDtypeStruct((1, C, 1), mm.dtype),
            jax.ShapeDtypeStruct((1, C, 1), mv.dtype),
        ),
        grid_spec=pltpu.PrefetchScalarGridSpec(
            num_scalar_prefetch=0,
            grid=(2, nt_n, nt_w),  # (phase, batch tile, spatial tile)
            in_specs=[x_spec, par_spec, par_spec, par_spec, par_spec],
            out_specs=[y_spec, par_spec, par_spec],
            scratch_shapes=[pltpu.VMEM((1, C, 1), jnp.float32)
                            for _ in range(5)],  # shift, s1, s2, scale, bias
        ),
        compiler_params=pltpu.CompilerParams(
            # Stats accumulate into shared VMEM scratch, then feed phase 1 ->
            # sequential dependency on every axis.
            dimension_semantics=("arbitrary", "arbitrary", "arbitrary"),
            vmem_limit_bytes=int(vmem_limit),
        ),
        cost_estimate=cost,
    )(x3, g3, b3, mm3, mv3)

    return (y3.reshape(N, C, H, W),
            new_mm3.reshape(1, C, 1, 1),
            new_mv3.reshape(1, C, 1, 1))


def _batch_norm_2d(x, gamma, beta, mm, mv, eps, momentum, block_bytes, vmem_limit):
    B, F = x.shape
    itemsize = jnp.dtype(x.dtype).itemsize
    g2 = gamma.reshape(1, F)
    b2 = beta.reshape(1, F)
    mm2 = mm.reshape(1, F)
    mv2 = mv.reshape(1, F)

    tb = _plan_2d_tiles(B, F, itemsize, block_bytes)
    nt_b = B // tb

    kernel = functools.partial(_bn2d_kernel, eps=float(eps),
                               momentum=float(momentum), m_total=float(B))

    x_spec = pl.BlockSpec((tb, F), lambda p, t: (t, 0))
    y_spec = pl.BlockSpec((tb, F), lambda p, t: (p * t, 0))
    par_spec = pl.BlockSpec((1, F), lambda p, t: (0, 0))

    reads = 1 if nt_b == 1 else 2
    cost = pl.CostEstimate(
        flops=int(10 * x.size),
        transcendentals=int(2 * F),
        bytes_accessed=int((reads + 1) * x.size * itemsize),
    )

    y, new_mm, new_mv = pl.pallas_call(
        kernel,
        out_shape=(
            jax.ShapeDtypeStruct((B, F), x.dtype),
            jax.ShapeDtypeStruct((1, F), mm.dtype),
            jax.ShapeDtypeStruct((1, F), mv.dtype),
        ),
        grid_spec=pltpu.PrefetchScalarGridSpec(
            num_scalar_prefetch=0,
            grid=(2, nt_b),  # (phase, batch tile)
            in_specs=[x_spec, par_spec, par_spec, par_spec, par_spec],
            out_specs=[y_spec, par_spec, par_spec],
            scratch_shapes=[pltpu.VMEM((1, F), jnp.float32) for _ in range(5)],
        ),
        compiler_params=pltpu.CompilerParams(
            dimension_semantics=("arbitrary", "arbitrary"),
            vmem_limit_bytes=int(vmem_limit),
        ),
        cost_estimate=cost,
    )(x, g2, b2, mm2, mv2)

    return y, new_mm, new_mv


def batch_norm_pallas(x, gamma, beta, moving_mean, moving_var,
                      eps=1e-5, momentum=0.9,
                      block_bytes=None, vmem_limit_bytes=None):
    """Training-mode batch norm.  x: (N,C,H,W) or (B,F).  Returns (Y, new_mm, new_mv)."""
    assert x.ndim in (2, 4), "batch_norm_pallas expects a 2-D or 4-D input"
    blk, limit = _vmem_plan(block_bytes, vmem_limit_bytes)
    if x.ndim == 2:
        return _batch_norm_2d(x, gamma, beta, moving_mean, moving_var,
                              eps, momentum, blk, limit)
    return _batch_norm_4d(x, gamma, beta, moving_mean, moving_var,
                          eps, momentum, blk, limit)


class BatchNormPallas:
    """Mirror of the PyTorch BatchNorm module (training-mode forward)."""

    def __init__(self, num_features, num_dims=4):
        shape = (1, num_features) if num_dims == 2 else (1, num_features, 1, 1)
        self.gamma = jnp.ones(shape, jnp.float32)
        self.beta = jnp.zeros(shape, jnp.float32)
        self.moving_mean = jnp.zeros(shape, jnp.float32)
        self.moving_var = jnp.ones(shape, jnp.float32)

    def __call__(self, x):
        # TODO(synk): eval-mode branch (normalize with running stats) not implemented.
        y, self.moving_mean, self.moving_var = batch_norm_pallas(
            x, self.gamma, self.beta, self.moving_mean, self.moving_var,
            eps=1e-5, momentum=0.9)
        return y


# ---------------------------------------------------------------------------
# Self-test
# ---------------------------------------------------------------------------
if __name__ == "__main__":
    key = jax.random.PRNGKey(0)
    k1, k2, k3 = jax.random.split(key, 3)

    # --- 4-D conv-style case (resident single-block path) ------------------
    N, C, H, W = 2, 4, 16, 16
    x = jax.random.uniform(k1, (N, C, H, W), dtype=jnp.float32)

    bn = BatchNormPallas(num_features=C, num_dims=4)
    y = bn(x)
    jax.block_until_ready((y, bn.moving_mean, bn.moving_var))

    mean_ref = jnp.mean(x, axis=(0, 2, 3), keepdims=True)
    var_ref = jnp.mean((x - mean_ref) ** 2, axis=(0, 2, 3), keepdims=True)
    y_ref = (x - mean_ref) / jnp.sqrt(var_ref + 1e-5)
    assert jnp.allclose(y, y_ref, atol=1e-4), "4D resident Y mismatch"
    assert jnp.allclose(bn.moving_mean, 0.1 * mean_ref, atol=1e-4)
    assert jnp.allclose(bn.moving_var, 0.9 + 0.1 * var_ref, atol=1e-4)

    # --- 4-D multi-tile spatial accumulation (force tiny block budget) ------
    gamma4 = jnp.full((1, C, 1, 1), 1.5, jnp.float32)
    beta4 = jnp.full((1, C, 1, 1), 0.25, jnp.float32)
    y2, mm2, mv2 = batch_norm_pallas(
        x, gamma4, beta4,
        jnp.zeros((1, C, 1, 1), jnp.float32), jnp.ones((1, C, 1, 1), jnp.float32),
        eps=1e-5, momentum=0.9, block_bytes=4096)
    jax.block_until_ready((y2, mm2, mv2))
    y2_ref = 1.5 * y_ref + 0.25
    assert jnp.allclose(y2, y2_ref, atol=1e-4), "4D multi-tile Y mismatch"
    assert jnp.allclose(mm2, 0.1 * mean_ref, atol=1e-4)
    assert jnp.allclose(mv2, 0.9 + 0.1 * var_ref, atol=1e-4)

    # --- 4-D ragged spatial extent (HW not a multiple of 128 -> batch tiling)
    Nr, Cr, Hr, Wr = 4, 8, 6, 10
    xr = jax.random.normal(k2, (Nr, Cr, Hr, Wr), dtype=jnp.float32)
    gr = jnp.ones((1, Cr, 1, 1), jnp.float32)
    br = jnp.zeros((1, Cr, 1, 1), jnp.float32)
    yr, mmr, mvr = batch_norm_pallas(
        xr, gr, br,
        jnp.zeros((1, Cr, 1, 1), jnp.float32), jnp.ones((1, Cr, 1, 1), jnp.float32),
        eps=1e-5, momentum=0.9, block_bytes=2048)
    jax.block_until_ready((yr, mmr, mvr))
    mr_ref = jnp.mean(xr, axis=(0, 2, 3), keepdims=True)
    vr_ref = jnp.mean((xr - mr_ref) ** 2, axis=(0, 2, 3), keepdims=True)
    yr_ref = (xr - mr_ref) / jnp.sqrt(vr_ref + 1e-5)
    assert jnp.allclose(yr, yr_ref, atol=1e-4), "4D ragged-HW Y mismatch"
    assert jnp.allclose(mmr, 0.1 * mr_ref, atol=1e-4)
    assert jnp.allclose(mvr, 0.9 + 0.1 * vr_ref, atol=1e-4)

    # --- 2-D fully-connected case (dedicated lane-dense kernel) -------------
    B, F = 16, 32
    xf = jax.random.normal(k3, (B, F), dtype=jnp.float32)
    gf = jnp.full((1, F), 2.0, jnp.float32)
    bf = jnp.full((1, F), -0.5, jnp.float32)
    yf, mmf, mvf = batch_norm_pallas(
        xf, gf, bf, jnp.zeros((1, F), jnp.float32), jnp.ones((1, F), jnp.float32),
        eps=1e-5, momentum=0.9, block_bytes=1024)  # forces 2 batch tiles
    jax.block_until_ready((yf, mmf, mvf))
    mf_ref = jnp.mean(xf, axis=0, keepdims=True)
    vf_ref = jnp.mean((xf - mf_ref) ** 2, axis=0, keepdims=True)
    yf_ref = 2.0 * (xf - mf_ref) / jnp.sqrt(vf_ref + 1e-5) - 0.5
    assert jnp.allclose(yf, yf_ref, atol=1e-4), "2D FC Y mismatch"
    assert jnp.allclose(mmf, 0.1 * mf_ref, atol=1e-4)
    assert jnp.allclose(mvf, 0.9 + 0.1 * vf_ref, atol=1e-4)

    print("KERNEL_OK")
</pallas_src>

<mosaic_0001>
module attributes {stable_mosaic.version = 11 : i64} {
  func.func @_bn4d_kernel(%arg0: i32, %arg1: i32, %arg2: i32, %arg3: memref<2x4x256xf32, #tpu.memory_space<vmem>>, %arg4: memref<1x4x1xf32, #tpu.memory_space<vmem>>, %arg5: memref<1x4x1xf32, #tpu.memory_space<vmem>>, %arg6: memref<1x4x1xf32, #tpu.memory_space<vmem>>, %arg7: memref<1x4x1xf32, #tpu.memory_space<vmem>>, %arg8: memref<2x4x256xf32, #tpu.memory_space<vmem>>, %arg9: memref<1x4x1xf32, #tpu.memory_space<vmem>>, %arg10: memref<1x4x1xf32, #tpu.memory_space<vmem>>, %arg11: memref<1x4x1xf32, #tpu.memory_space<vmem>>, %arg12: memref<1x4x1xf32, #tpu.memory_space<vmem>>, %arg13: memref<1x4x1xf32, #tpu.memory_space<vmem>>, %arg14: memref<1x4x1xf32, #tpu.memory_space<vmem>>, %arg15: memref<1x4x1xf32, #tpu.memory_space<vmem>>) attributes {dimension_semantics = [#tpu.dimension_semantics<arbitrary>, #tpu.dimension_semantics<arbitrary>, #tpu.dimension_semantics<arbitrary>], iteration_bounds = array<i64: 2, 1, 1>, scalar_prefetch = 0 : i64, scratch_operands = 5 : i64, tpu.core_type = #tpu.core_type<tc>, window_params = [{transform_indices = @transform_0, window_bounds = array<i64: 2, 4, 256>}, {pipeline_mode = #tpu.pipeline_mode<synchronous>, transform_indices = @transform_1, window_bounds = array<i64: 1, 4, 1>}, {pipeline_mode = #tpu.pipeline_mode<synchronous>, transform_indices = @transform_2, window_bounds = array<i64: 1, 4, 1>}, {pipeline_mode = #tpu.pipeline_mode<synchronous>, transform_indices = @transform_3, window_bounds = array<i64: 1, 4, 1>}, {pipeline_mode = #tpu.pipeline_mode<synchronous>, transform_indices = @transform_4, window_bounds = array<i64: 1, 4, 1>}, {transform_indices = @transform_5, window_bounds = array<i64: 2, 4, 256>}, {pipeline_mode = #tpu.pipeline_mode<synchronous>, transform_indices = @transform_6, window_bounds = array<i64: 1, 4, 1>}, {pipeline_mode = #tpu.pipeline_mode<synchronous>, transform_indices = @transform_7, window_bounds = array<i64: 1, 4, 1>}]} {
    %c0_i32 = arith.constant 0 : i32
    %0 = arith.cmpi eq, %arg1, %c0_i32 : i32
    %c0_i32_0 = arith.constant 0 : i32
    %1 = arith.cmpi eq, %arg2, %c0_i32_0 : i32
    %2 = arith.andi %0, %1 : i1
    %c0_i32_1 = arith.constant 0 : i32
    %3 = arith.cmpi eq, %arg1, %c0_i32_1 : i32
    %c0_i32_2 = arith.constant 0 : i32
    %4 = arith.cmpi eq, %arg2, %c0_i32_2 : i32
    %5 = arith.andi %3, %4 : i1
    %c0_i32_3 = arith.constant 0 : i32
    %6 = arith.cmpi eq, %arg0, %c0_i32_3 : i32
    %7 = arith.extui %6 : i1 to i32
    %c0_i32_4 = arith.constant 0 : i32
    %8 = arith.cmpi ne, %7, %c0_i32_4 : i32
    scf.if %8 {
      %c0 = arith.constant 0 : index
      %c0_6 = arith.constant 0 : index
      %c0_7 = arith.constant 0 : index
      %12 = vector.load %arg3[%c0, %c0_6, %c0_7] : memref<2x4x256xf32, #tpu.memory_space<vmem>>, vector<2x4x256xf32>
      %13 = arith.extui %2 : i1 to i32
      %c0_i32_8 = arith.constant 0 : i32
      %14 = arith.cmpi ne, %13, %c0_i32_8 : i32
      scf.if %14 {
        %cst_28 = arith.constant dense<0.000000e+00> : vector<2x4xf32>
        %35 = vector.multi_reduction <add>, %12, %cst_28 [2] : vector<2x4x256xf32> to vector<2x4xf32>
        %36 = vector.shape_cast %35 : vector<2x4xf32> to vector<2x4x1xf32>
        %cst_29 = arith.constant dense<0.000000e+00> : vector<4x1xf32>
        %37 = vector.multi_reduction <add>, %36, %cst_29 [0] : vector<2x4x1xf32> to vector<4x1xf32>
        %38 = vector.shape_cast %37 : vector<4x1xf32> to vector<1x4x1xf32>
        %cst_30 = arith.constant 0.001953125 : f32
        %39 = vector.broadcast %cst_30 : f32 to vector<1x4x1xf32>
        %40 = arith.mulf %38, %39 : vector<1x4x1xf32>
        %c0_31 = arith.constant 0 : index
        %c0_32 = arith.constant 0 : index
        %c0_33 = arith.constant 0 : index
        %41 = vector.load %arg11[%c0_31, %c0_32, %c0_33] : memref<1x4x1xf32, #tpu.memory_space<vmem>>, vector<1x4x1xf32>
        tpu.vector_store %arg11[%c0_31, %c0_32, %c0_33], %40 {strides = array<i32>} : memref<1x4x1xf32, #tpu.memory_space<vmem>>, vector<1x4x1xf32>,
        %cst_34 = arith.constant 0.000000e+00 : f32
        %42 = vector.broadcast %cst_34 : f32 to vector<1x4x1xf32>
        %c0_35 = arith.constant 0 : index
        %c0_36 = arith.constant 0 : index
        %c0_37 = arith.constant 0 : index
        %43 = vector.load %arg12[%c0_35, %c0_36, %c0_37] : memref<1x4x1xf32, #tpu.memory_space<vmem>>, vector<1x4x1xf32>
        tpu.vector_store %arg12[%c0_35, %c0_36, %c0_37], %42 {strides = array<i32>} : memref<1x4x1xf32, #tpu.memory_space<vmem>>, vector<1x4x1xf32>,
        %cst_38 = arith.constant 0.000000e+00 : f32
        %44 = vector.broadcast %cst_38 : f32 to vector<1x4x1xf32>
        %c0_39 = arith.constant 0 : index
        %c0_40 = arith.constant 0 : index
        %c0_41 = arith.constant 0 : index
        %45 = vector.load %arg13[%c0_39, %c0_40, %c0_41] : memref<1x4x1xf32, #tpu.memory_space<vmem>>, vector<1x4x1xf32>
        tpu.vector_store %arg13[%c0_39, %c0_40, %c0_41], %44 {strides = array<i32>} : memref<1x4x1xf32, #tpu.memory_space<vmem>>, vector<1x4x1xf32>,
      } else {
      }
      %c0_9 = arith.constant 0 : index
      %c0_10 = arith.constant 0 : index
      %c0_11 = arith.constant 0 : index
      %15 = vector.load %arg11[%c0_9, %c0_10, %c0_11] : memref<1x4x1xf32, #tpu.memory_space<vmem>>, vector<1x4x1xf32>
      %16 = vector.broadcast %15 : vector<1x4x1xf32> to vector<2x4x256xf32>
      %17 = arith.subf %12, %16 : vector<2x4x256xf32>
      %c0_12 = arith.constant 0 : index
      %c0_13 = arith.constant 0 : index
      %c0_14 = arith.constant 0 : index
      %18 = vector.load %arg12[%c0_12, %c0_13, %c0_14] : memref<1x4x1xf32, #tpu.memory_space<vmem>>, vector<1x4x1xf32>
      %cst = arith.constant dense<0.000000e+00> : vector<2x4xf32>
      %19 = vector.multi_reduction <add>, %17, %cst [2] : vector<2x4x256xf32> to vector<2x4xf32>
      %20 = vector.shape_cast %19 : vector<2x4xf32> to vector<2x4x1xf32>
      %cst_15 = arith.constant dense<0.000000e+00> : vector<4x1xf32>
      %21 = vector.multi_reduction <add>, %20, %cst_15 [0] : vector<2x4x1xf32> to vector<4x1xf32>
      %22 = vector.shape_cast %21 : vector<4x1xf32> to vector<1x4x1xf32>
      %23 = arith.addf %18, %22 : vector<1x4x1xf32>
      %c0_16 = arith.constant 0 : index
      %c0_17 = arith.constant 0 : index
      %c0_18 = arith.constant 0 : index
      %24 = vector.load %arg12[%c0_16, %c0_17, %c0_18] : memref<1x4x1xf32, #tpu.memory_space<vmem>>, vector<1x4x1xf32>
      tpu.vector_store %arg12[%c0_16, %c0_17, %c0_18], %23 {strides = array<i32>} : memref<1x4x1xf32, #tpu.memory_space<vmem>>, vector<1x4x1xf32>,
      %c0_19 = arith.constant 0 : index
      %c0_20 = arith.constant 0 : index
      %c0_21 = arith.constant 0 : index
      %25 = vector.load %arg13[%c0_19, %c0_20, %c0_21] : memref<1x4x1xf32, #tpu.memory_space<vmem>>, vector<1x4x1xf32>
      %26 = arith.mulf %17, %17 : vector<2x4x256xf32>
      %cst_22 = arith.constant dense<0.000000e+00> : vector<2x4xf32>
      %27 = vector.multi_reduction <add>, %26, %cst_22 [2] : vector<2x4x256xf32> to vector<2x4xf32>
      %28 = vector.shape_cast %27 : vector<2x4xf32> to vector<2x4x1xf32>
      %cst_23 = arith.constant dense<0.000000e+00> : vector<4x1xf32>
      %29 = vector.multi_reduction <add>, %28, %cst_23 [0] : vector<2x4x1xf32> to vector<4x1xf32>
      %30 = vector.shape_cast %29 : vector<4x1xf32> to vector<1x4x1xf32>
      %31 = arith.addf %25, %30 : vector<1x4x1xf32>
      %c0_24 = arith.constant 0 : index
      %c0_25 = arith.constant 0 : index
      %c0_26 = arith.constant 0 : index
      %32 = vector.load %arg13[%c0_24, %c0_25, %c0_26] : memref<1x4x1xf32, #tpu.memory_space<vmem>>, vector<1x4x1xf32>
      tpu.vector_store %arg13[%c0_24, %c0_25, %c0_26], %31 {strides = array<i32>} : memref<1x4x1xf32, #tpu.memory_space<vmem>>, vector<1x4x1xf32>,
      %33 = arith.extui %5 : i1 to i32
      %c0_i32_27 = arith.constant 0 : i32
      %34 = arith.cmpi ne, %33, %c0_i32_27 : i32
      scf.if %34 {
        %c0_28 = arith.constant 0 : index
        %c0_29 = arith.constant 0 : index
        %c0_30 = arith.constant 0 : index
        %35 = vector.load %arg12[%c0_28, %c0_29, %c0_30] : memref<1x4x1xf32, #tpu.memory_space<vmem>>, vector<1x4x1xf32>
        %cst_31 = arith.constant 0.001953125 : f32
        %36 = vector.broadcast %cst_31 : f32 to vector<1x4x1xf32>
        %37 = arith.mulf %35, %36 : vector<1x4x1xf32>
        %c0_32 = arith.constant 0 : index
        %c0_33 = arith.constant 0 : index
        %c0_34 = arith.constant 0 : index
        %38 = vector.load %arg11[%c0_32, %c0_33, %c0_34] : memref<1x4x1xf32, #tpu.memory_space<vmem>>, vector<1x4x1xf32>
        %39 = arith.addf %38, %37 : vector<1x4x1xf32>
        %c0_35 = arith.constant 0 : index
        %c0_36 = arith.constant 0 : index
        %c0_37 = arith.constant 0 : index
        %40 = vector.load %arg13[%c0_35, %c0_36, %c0_37] : memref<1x4x1xf32, #tpu.memory_space<vmem>>, vector<1x4x1xf32>
        %cst_38 = arith.constant 0.001953125 : f32
        %41 = vector.broadcast %cst_38 : f32 to vector<1x4x1xf32>
        %42 = arith.mulf %40, %41 : vector<1x4x1xf32>
        %43 = arith.mulf %37, %37 : vector<1x4x1xf32>
        %44 = arith.subf %42, %43 : vector<1x4x1xf32>
        %cst_39 = arith.constant 0.000000e+00 : f32
        %45 = vector.broadcast %cst_39 : f32 to vector<1x4x1xf32>
        %46 = arith.maximumf %44, %45 : vector<1x4x1xf32>
        %cst_40 = arith.constant 9.99999974E-6 : f32
        %47 = vector.broadcast %cst_40 : f32 to vector<1x4x1xf32>
        %48 = arith.addf %46, %47 : vector<1x4x1xf32>
        %49 = math.rsqrt %48 : vector<1x4x1xf32>
        %c0_41 = arith.constant 0 : index
        %c0_42 = arith.constant 0 : index
        %c0_43 = arith.constant 0 : index
        %50 = vector.load %arg4[%c0_41, %c0_42, %c0_43] : memref<1x4x1xf32, #tpu.memory_space<vmem>>, vector<1x4x1xf32>
        %c0_44 = arith.constant 0 : index
        %c0_45 = arith.constant 0 : index
        %c0_46 = arith.constant 0 : index
        %51 = vector.load %arg5[%c0_44, %c0_45, %c0_46] : memref<1x4x1xf32, #tpu.memory_space<vmem>>, vector<1x4x1xf32>
        %52 = arith.mulf %50, %49 : vector<1x4x1xf32>
        %c0_47 = arith.constant 0 : index
        %c0_48 = arith.constant 0 : index
        %c0_49 = arith.constant 0 : index
        %53 = vector.load %arg14[%c0_47, %c0_48, %c0_49] : memref<1x4x1xf32, #tpu.memory_space<vmem>>, vector<1x4x1xf32>
        tpu.vector_store %arg14[%c0_47, %c0_48, %c0_49], %52 {strides = array<i32>} : memref<1x4x1xf32, #tpu.memory_space<vmem>>, vector<1x4x1xf32>,
        %54 = arith.mulf %39, %50 : vector<1x4x1xf32>
        %55 = arith.mulf %54, %49 : vector<1x4x1xf32>
        %56 = arith.subf %51, %55 : vector<1x4x1xf32>
        %c0_50 = arith.constant 0 : index
        %c0_51 = arith.constant 0 : index
        %c0_52 = arith.constant 0 : index
        %57 = vector.load %arg15[%c0_50, %c0_51, %c0_52] : memref<1x4x1xf32, #tpu.memory_space<vmem>>, vector<1x4x1xf32>
        tpu.vector_store %arg15[%c0_50, %c0_51, %c0_52], %56 {strides = array<i32>} : memref<1x4x1xf32, #tpu.memory_space<vmem>>, vector<1x4x1xf32>,
        %c0_53 = arith.constant 0 : index
        %c0_54 = arith.constant 0 : index
        %c0_55 = arith.constant 0 : index
        %58 = vector.load %arg6[%c0_53, %c0_54, %c0_55] : memref<1x4x1xf32, #tpu.memory_space<vmem>>, vector<1x4x1xf32>
        %cst_56 = arith.constant 0.899999976 : f32
        %59 = vector.broadcast %cst_56 : f32 to vector<1x4x1xf32>
        %60 = arith.mulf %59, %58 : vector<1x4x1xf32>
        %cst_57 = arith.constant 1.000000e-01 : f32
        %61 = vector.broadcast %cst_57 : f32 to vector<1x4x1xf32>
        %62 = arith.mulf %61, %39 : vector<1x4x1xf32>
        %63 = arith.addf %60, %62 : vector<1x4x1xf32>
        %c0_58 = arith.constant 0 : index
        %c0_59 = arith.constant 0 : index
        %c0_60 = arith.constant 0 : index
        %64 = vector.load %arg9[%c0_58, %c0_59, %c0_60] : memref<1x4x1xf32, #tpu.memory_space<vmem>>, vector<1x4x1xf32>
        tpu.vector_store %arg9[%c0_58, %c0_59, %c0_60], %63 {strides = array<i32>} : memref<1x4x1xf32, #tpu.memory_space<vmem>>, vector<1x4x1xf32>,
        %c0_61 = arith.constant 0 : index
        %c0_62 = arith.constant 0 : index
        %c0_63 = arith.constant 0 : index
        %65 = vector.load %arg7[%c0_61, %c0_62, %c0_63] : memref<1x4x1xf32, #tpu.memory_space<vmem>>, vector<1x4x1xf32>
        %cst_64 = arith.constant 0.899999976 : f32
        %66 = vector.broadcast %cst_64 : f32 to vector<1x4x1xf32>
        %67 = arith.mulf %66, %65 : vector<1x4x1xf32>
        %cst_65 = arith.constant 1.000000e-01 : f32
        %68 = vector.broadcast %cst_65 : f32 to vector<1x4x1xf32>
        %69 = arith.mulf %68, %46 : vector<1x4x1xf32>
        %70 = arith.addf %67, %69 : vector<1x4x1xf32>
        %c0_66 = arith.constant 0 : index
        %c0_67 = arith.constant 0 : index
        %c0_68 = arith.constant 0 : index
        %71 = vector.load %arg10[%c0_66, %c0_67, %c0_68] : memref<1x4x1xf32, #tpu.memory_space<vmem>>, vector<1x4x1xf32>
        tpu.vector_store %arg10[%c0_66, %c0_67, %c0_68], %70 {strides = array<i32>} : memref<1x4x1xf32, #tpu.memory_space<vmem>>, vector<1x4x1xf32>,
      } else {
      }
    } else {
    }
    %c1_i32 = arith.constant 1 : i32
    %9 = arith.cmpi eq, %arg0, %c1_i32 : i32
    %10 = arith.extui %9 : i1 to i32
    %c0_i32_5 = arith.constant 0 : i32
    %11 = arith.cmpi ne, %10, %c0_i32_5 : i32
    scf.if %11 {
      %c0 = arith.constant 0 : index
      %c0_6 = arith.constant 0 : index
      %c0_7 = arith.constant 0 : index
      %12 = vector.load %arg3[%c0, %c0_6, %c0_7] : memref<2x4x256xf32, #tpu.memory_space<vmem>>, vector<2x4x256xf32>
      %c0_8 = arith.constant 0 : index
      %c0_9 = arith.constant 0 : index
      %c0_10 = arith.constant 0 : index
      %13 = vector.load %arg14[%c0_8, %c0_9, %c0_10] : memref<1x4x1xf32, #tpu.memory_space<vmem>>, vector<1x4x1xf32>
      %14 = vector.broadcast %13 : vector<1x4x1xf32> to vector<2x4x256xf32>
      %15 = arith.mulf %12, %14 : vector<2x4x256xf32>
      %c0_11 = arith.constant 0 : index
      %c0_12 = arith.constant 0 : index
      %c0_13 = arith.constant 0 : index
      %16 = vector.load %arg15[%c0_11, %c0_12, %c0_13] : memref<1x4x1xf32, #tpu.memory_space<vmem>>, vector<1x4x1xf32>
      %17 = vector.broadcast %16 : vector<1x4x1xf32> to vector<2x4x256xf32>
      %18 = arith.addf %15, %17 : vector<2x4x256xf32>
      %c0_14 = arith.constant 0 : index
      %c0_15 = arith.constant 0 : index
      %c0_16 = arith.constant 0 : index
      %19 = vector.load %arg8[%c0_14, %c0_15, %c0_16] : memref<2x4x256xf32, #tpu.memory_space<vmem>>, vector<2x4x256xf32>
      tpu.vector_store %arg8[%c0_14, %c0_15, %c0_16], %18 {strides = array<i32>} : memref<2x4x256xf32, #tpu.memory_space<vmem>>, vector<2x4x256xf32>,
    } else {
    }
    return
  }
  func.func @transform_0(%arg0: i32, %arg1: i32, %arg2: i32) -> (i32, i32, i32) {
    %c0_i32 = arith.constant 0 : i32
    %c0_i32_0 = arith.constant 0 : i32
    return %arg1, %c0_i32, %arg2 : i32, i32, i32
  }
  func.func @transform_1(%arg0: i32, %arg1: i32, %arg2: i32) -> (i32, i32, i32) {
    %c0_i32 = arith.constant 0 : i32
    %c0_i32_0 = arith.constant 0 : i32
    %c0_i32_1 = arith.constant 0 : i32
    %c0_i32_2 = arith.constant 0 : i32
    return %c0_i32, %c0_i32_0, %c0_i32_1 : i32, i32, i32
  }
  func.func @transform_2(%arg0: i32, %arg1: i32, %arg2: i32) -> (i32, i32, i32) {
    %c0_i32 = arith.constant 0 : i32
    %c0_i32_0 = arith.constant 0 : i32
    %c0_i32_1 = arith.constant 0 : i32
    %c0_i32_2 = arith.constant 0 : i32
    return %c0_i32, %c0_i32_0, %c0_i32_1 : i32, i32, i32
  }
  func.func @transform_3(%arg0: i32, %arg1: i32, %arg2: i32) -> (i32, i32, i32) {
    %c0_i32 = arith.constant 0 : i32
    %c0_i32_0 = arith.constant 0 : i32
    %c0_i32_1 = arith.constant 0 : i32
    %c0_i32_2 = arith.constant 0 : i32
    return %c0_i32, %c0_i32_0, %c0_i32_1 : i32, i32, i32
  }
  func.func @transform_4(%arg0: i32, %arg1: i32, %arg2: i32) -> (i32, i32, i32) {
    %c0_i32 = arith.constant 0 : i32
    %c0_i32_0 = arith.constant 0 : i32
    %c0_i32_1 = arith.constant 0 : i32
    %c0_i32_2 = arith.constant 0 : i32
    return %c0_i32, %c0_i32_0, %c0_i32_1 : i32, i32, i32
  }
  func.func @transform_5(%arg0: i32, %arg1: i32, %arg2: i32) -> (i32, i32, i32) {
    %0 = arith.muli %arg0, %arg1 : i32
    %1 = arith.muli %arg0, %arg2 : i32
    %c0_i32 = arith.constant 0 : i32
    %c0_i32_0 = arith.constant 0 : i32
    return %0, %c0_i32, %1 : i32, i32, i32
  }
  func.func @transform_6(%arg0: i32, %arg1: i32, %arg2: i32) -> (i32, i32, i32) {
    %c0_i32 = arith.constant 0 : i32
    %c0_i32_0 = arith.constant 0 : i32
    %c0_i32_1 = arith.constant 0 : i32
    %c0_i32_2 = arith.constant 0 : i32
    return %c0_i32, %c0_i32_0, %c0_i32_1 : i32, i32, i32
  }
  func.func @transform_7(%arg0: i32, %arg1: i32, %arg2: i32) -> (i32, i32, i32) {
    %c0_i32 = arith.constant 0 : i32
    %c0_i32_0 = arith.constant 0 : i32
    %c0_i32_1 = arith.constant 0 : i32
    %c0_i32_2 = arith.constant 0 : i32
    return %c0_i32, %c0_i32_0, %c0_i32_1 : i32, i32, i32
  }
}

</mosaic_0001>

<llo_original>
// kernel: tpu_custom_call.1
$region0: #{tpu_custom_call.1}
  #allocation0 [shape = 'u32[]', space=smem, size = 0x4, offset = 0x4, fixed_abs, tag = 'smem constant byte address 0x4 - core index']
  #allocation1 [shape = 'u32[144,128]{1,0:T(1,128)}', space=vmem, size = 0x12000, scoped, tag = 'internal scratch']
  #allocation2 [shape = 'f32[1,4,1]{2,1,0:T(4,128)}', space=vmem, size = 0x800, scoped, tag = 'scratch operand']
  #allocation3 [shape = 'f32[1,4,1]{2,1,0:T(4,128)}', space=vmem, size = 0x800, scoped, tag = 'scratch operand']
  #allocation4 [shape = 'f32[1,4,1]{2,1,0:T(4,128)}', space=vmem, size = 0x800, scoped, tag = 'scratch operand']
  #allocation5 [shape = 'f32[1,4,1]{2,1,0:T(4,128)}', space=vmem, size = 0x800, scoped, tag = 'scratch operand']
  #allocation6 [shape = 'f32[1,4,1]{2,1,0:T(4,128)}', space=vmem, size = 0x800, scoped, tag = 'scratch operand']
  %s0 = inlined_call_operand.vmem [shape: f32[2,4,256], index: 0, kind: input, shape index: {}]
  %s1 = inlined_call_operand.vmem [shape: f32[1,4,1], index: 1, kind: input, shape index: {}]
  %s2 = inlined_call_operand.vmem [shape: f32[1,4,1], index: 2, kind: input, shape index: {}]
  %s3 = inlined_call_operand.vmem [shape: f32[1,4,1], index: 3, kind: input, shape index: {}]
  %s4 = inlined_call_operand.vmem [shape: f32[1,4,1], index: 4, kind: input, shape index: {}]
  %s5 = inlined_call_operand.hbm [shape: f32[2,4,256], index: 5, kind: output, shape index: {0}]
  %s6 = inlined_call_operand.vmem [shape: f32[1,4,1], index: 6, kind: output, shape index: {1}]
  %s7 = inlined_call_operand.vmem [shape: f32[1,4,1], index: 7, kind: output, shape index: {2}]
  %8 = xla_tuple %s5, %s6, %s7
  %s9 = sld [smem:[#allocation0]]
  $region85: #{tpu_custom_call.1} parent=0
    _
  %s11 = ssub.s32 1, %s9
  %s12 = scalar_select 0, %s11, %s9
  $region1: #{tpu_custom_call.1} parent=0
    #allocation7 [shape = 'u8[16384]{0}', space=vmem, size = 0x4000, scoped, tag = 'output window, operand 0']
    #allocation8 [shape = 's32[2]{0}', space=sflag, size = 0x8, scoped, tag = 'scoped memory for tpu_custom_call.1']
    %13 = vsyncpa [#allocation8], 0
    %s14 = scalar_lea.sflag [#allocation8], 1
    %15 = vsyncpa %s14, 0
    loop: start=0, step=1, limit=4
    $region2: #{tpu_custom_call.1} parent=1 // loop_pre_header
      _
    $region3: #{tpu_custom_call.1} parent=1 // loop_header
      %s17 = sphi 0, %s21
      %p18 = scmp.ge.s32.totalorder %s17, 4
      %s24 = sphi 0, %s43
      %s25 = sphi 0, %s39
      %s26 = sphi 0, %s35
      %s27 = sphi 0, %s24
      %s28 = sphi 0, %s25
      %s29 = sphi 0, %s26
      %s30 = sphi 0, %s27
      %s31 = sphi 0, %s28
      %s32 = sphi 0, %s29
      %s48 = sphi 0, %s50
      %s51 = sphi 0, %s48
      %s52 = sphi 0, %s51
      %s68 = sphi 0, %s52
      %s72 = sphi 0, %s72
      %s74 = sphi 0, %s72
      %s75 = sphi 0, %s74
      %s89 = sphi 0, %s75
      %s93 = sphi 0, %s93
      %s95 = sphi 0, %s93
      %s96 = sphi 0, %s95
      %s110 = sphi 0, %s96
      %s114 = sphi 0, %s114
      %s116 = sphi 0, %s114
      %s117 = sphi 0, %s116
      %s131 = sphi 0, %s117
      %s135 = sphi 0, %s135
      %s137 = sphi 0, %s135
      %s138 = sphi 0, %s137
      %s152 = sphi 0, %s138
      %s164 = sphi 0, %s166
      %s167 = sphi 0, %s164
      %s168 = sphi 0, %s167
      %s184 = sphi 0, %s168
      %s188 = sphi 0, %s188
      %s190 = sphi 0, %s188
      %s191 = sphi 0, %s190
      %s205 = sphi 0, %s191
      %s209 = sphi 0, %s209
      %s211 = sphi 0, %s209
      %s212 = sphi 0, %s211
      %s226 = sphi 0, %s212
    $region4: #{tpu_custom_call.1} parent=1 // loop_header_branch
      %20 = sbr.rel (%p18) target = $region8
    $region5: #{tpu_custom_call.1} parent=1 // loop_body
      %s22 = ssub.s32 %s17, 1
      %s23 = ssub.s32 %s17, 2
      %s33 = sadd.s32 1, %s26
      %p34 = scmp.ge.s32.totalorder %s33, 1
      %s35 = scalar_select %p34, 0, %s33
      %s36 = sadd.s32 1, %s25
      %s37 = scalar_select %p34, %s36, %s25
      %p38 = scmp.ge.s32.totalorder %s37, 1
      %s39 = scalar_select %p38, 0, %s37
      %s40 = sadd.s32 1, %s24
      %s41 = scalar_select %p38, %s40, %s24
      %p42 = scmp.ge.s32.totalorder %s41, 2
      %s43 = scalar_select %p42, 0, %s41
      %s44 = ssub.s32 %s25, %s39
      %s45 = ssub.s32 %s26, %s35
      %s46 = sor.u32 %s44, %s45
      %p47 = scmp.eq.s32.totalorder %s46, 0
      %s49 = sadd.s32 %s48, 1
      %s50 = scalar_select %p47, %s48, %s49
      %p53 = pneg %p47
      %p54 = scmp.eq.s32.totalorder %s17, 1
      %p55 = por %p53, %p54
      %p56 = scmp.ne.s32.totalorder %s48, %s51
      %p57 = scmp.eq.s32.totalorder %s17, 0
      %p58 = por %p56, %p57
      %p59 = scmp.ne.s32.totalorder %s48, %s51
      %p60 = scmp.eq.s32.totalorder %s22, 1
      %p61 = por %p59, %p60
      %p62 = scmp.ne.s32.totalorder %s51, %s52
      %p63 = scmp.eq.s32.totalorder %s22, 0
      %p64 = por %p62, %p63
      %p65 = scmp.ne.s32.totalorder %s51, %s52
      %p66 = scmp.eq.s32.totalorder %s23, 1
      %p67 = por %p65, %p66
      %p69 = scmp.ne.s32.totalorder %s52, %s68
      %p70 = scmp.eq.s32.totalorder %s23, 0
      %p71 = por %p69, %p70
      %s73 = sadd.s32 %s72, 1
      %p76 = scmp.eq.s32.totalorder %s17, 1
      %p77 = scmp.ne.s32.totalorder %s72, %s74
      %p78 = scmp.eq.s32.totalorder %s17, 0
      %p79 = por %p77, %p78
      %p80 = scmp.ne.s32.totalorder %s72, %s74
      %p81 = scmp.eq.s32.totalorder %s22, 1
      %p82 = por %p80, %p81
      %p83 = scmp.ne.s32.totalorder %s74, %s75
      %p84 = scmp.eq.s32.totalorder %s22, 0
      %p85 = por %p83, %p84
      %p86 = scmp.ne.s32.totalorder %s74, %s75
      %p87 = scmp.eq.s32.totalorder %s23, 1
      %p88 = por %p86, %p87
      %p90 = scmp.ne.s32.totalorder %s75, %s89
      %p91 = scmp.eq.s32.totalorder %s23, 0
      %p92 = por %p90, %p91
      %s94 = sadd.s32 %s93, 1
      %p97 = scmp.eq.s32.totalorder %s17, 1
      %p98 = scmp.ne.s32.totalorder %s93, %s95
      %p99 = scmp.eq.s32.totalorder %s17, 0
      %p100 = por %p98, %p99
      %p101 = scmp.ne.s32.totalorder %s93, %s95
      %p102 = scmp.eq.s32.totalorder %s22, 1
      %p103 = por %p101, %p102
      %p104 = scmp.ne.s32.totalorder %s95, %s96
      %p105 = scmp.eq.s32.totalorder %s22, 0
      %p106 = por %p104, %p105
      %p107 = scmp.ne.s32.totalorder %s95, %s96
      %p108 = scmp.eq.s32.totalorder %s23, 1
      %p109 = por %p107, %p108
      %p111 = scmp.ne.s32.totalorder %s96, %s110
      %p112 = scmp.eq.s32.totalorder %s23, 0
      %p113 = por %p111, %p112
      %s115 = sadd.s32 %s114, 1
      %p118 = scmp.eq.s32.totalorder %s17, 1
      %p119 = scmp.ne.s32.totalorder %s114, %s116
      %p120 = scmp.eq.s32.totalorder %s17, 0
      %p121 = por %p119, %p120
      %p122 = scmp.ne.s32.totalorder %s114, %s116
      %p123 = scmp.eq.s32.totalorder %s22, 1
      %p124 = por %p122, %p123
      %p125 = scmp.ne.s32.totalorder %s116, %s117
      %p126 = scmp.eq.s32.totalorder %s22, 0
      %p127 = por %p125, %p126
      %p128 = scmp.ne.s32.totalorder %s116, %s117
      %p129 = scmp.eq.s32.totalorder %s23, 1
      %p130 = por %p128, %p129
      %p132 = scmp.ne.s32.totalorder %s117, %s131
      %p133 = scmp.eq.s32.totalorder %s23, 0
      %p134 = por %p132, %p133
      %s136 = sadd.s32 %s135, 1
      %p139 = scmp.eq.s32.totalorder %s17, 1
      %p140 = scmp.ne.s32.totalorder %s135, %s137
      %p141 = scmp.eq.s32.totalorder %s17, 0
      %p142 = por %p140, %p141
      %p143 = scmp.ne.s32.totalorder %s135, %s137
      %p144 = scmp.eq.s32.totalorder %s22, 1
      %p145 = por %p143, %p144
      %p146 = scmp.ne.s32.totalorder %s137, %s138
      %p147 = scmp.eq.s32.totalorder %s22, 0
      %p148 = por %p146, %p147
      %p149 = scmp.ne.s32.totalorder %s137, %s138
      %p150 = scmp.eq.s32.totalorder %s23, 1
      %p151 = por %p149, %p150
      %p153 = scmp.ne.s32.totalorder %s138, %s152
      %p154 = scmp.eq.s32.totalorder %s23, 0
      %p155 = por %p153, %p154
      %s156 = smul.u32 %s24, %s25
      %s157 = smul.u32 %s24, %s26
      %s158 = smul.u32 %s43, %s39
      %s159 = smul.u32 %s43, %s35
      %s160 = ssub.s32 %s156, %s158
      %s161 = ssub.s32 %s157, %s159
      %s162 = sor.u32 %s160, %s161
      %p163 = scmp.eq.s32.totalorder %s162, 0
      %s165 = sadd.s32 %s164, 1
      %s166 = scalar_select %p163, %s164, %s165
      %p169 = pneg %p163
      %p170 = scmp.eq.s32.totalorder %s17, 1
      %p171 = por %p169, %p170
      %p172 = scmp.ne.s32.totalorder %s164, %s167
      %p173 = scmp.eq.s32.totalorder %s17, 0
      %p174 = por %p172, %p173
      %p175 = scmp.ne.s32.totalorder %s164, %s167
      %p176 = scmp.eq.s32.totalorder %s22, 1
      %p177 = por %p175, %p176
      %p178 = scmp.ne.s32.totalorder %s167, %s168
      %p179 = scmp.eq.s32.totalorder %s22, 0
      %p180 = por %p178, %p179
      %p181 = scmp.ne.s32.totalorder %s167, %s168
      %p182 = scmp.eq.s32.totalorder %s23, 1
      %p183 = por %p181, %p182
      %p185 = scmp.ne.s32.totalorder %s168, %s184
      %p186 = scmp.eq.s32.totalorder %s23, 0
      %p187 = por %p185, %p186
      %s189 = sadd.s32 %s188, 1
      %p192 = scmp.eq.s32.totalorder %s17, 1
      %p193 = scmp.ne.s32.totalorder %s188, %s190
      %p194 = scmp.eq.s32.totalorder %s17, 0
      %p195 = por %p193, %p194
      %p196 = scmp.ne.s32.totalorder %s188, %s190
      %p197 = scmp.eq.s32.totalorder %s22, 1
      %p198 = por %p196, %p197
      %p199 = scmp.ne.s32.totalorder %s190, %s191
      %p200 = scmp.eq.s32.totalorder %s22, 0
      %p201 = por %p199, %p200
      %p202 = scmp.ne.s32.totalorder %s190, %s191
      %p203 = scmp.eq.s32.totalorder %s23, 1
      %p204 = por %p202, %p203
      %p206 = scmp.ne.s32.totalorder %s191, %s205
      %p207 = scmp.eq.s32.totalorder %s23, 0
      %p208 = por %p206, %p207
      %s210 = sadd.s32 %s209, 1
      %p213 = scmp.eq.s32.totalorder %s17, 1
      %p214 = scmp.ne.s32.totalorder %s209, %s211
      %p215 = scmp.eq.s32.totalorder %s17, 0
      %p216 = por %p214, %p215
      %p217 = scmp.ne.s32.totalorder %s209, %s211
      %p218 = scmp.eq.s32.totalorder %s22, 1
      %p219 = por %p217, %p218
      %p220 = scmp.ne.s32.totalorder %s211, %s212
      %p221 = scmp.eq.s32.totalorder %s22, 0
      %p222 = por %p220, %p221
      %p223 = scmp.ne.s32.totalorder %s211, %s212
      %p224 = scmp.eq.s32.totalorder %s23, 1
      %p225 = por %p223, %p224
      %p227 = scmp.ne.s32.totalorder %s212, %s226
      %p228 = scmp.eq.s32.totalorder %s23, 0
      %p229 = por %p227, %p228
      %p230 = scmp.le.s32.totalorder 1, %s17
      %p231 = scmp.lt.s32.totalorder %s17, 3
      %p232 = pnand %p230, %p231
      %p233 = pneg %p232
      // Predicated region
      $region9: #{tpu_custom_call.1} parent=5 // pred_check
        _
      $region10: #{tpu_custom_call.1} parent=5 // pred_check_branch
        %235 = sbr.rel (%p232) target = $region12
      $region11: #{tpu_custom_call.1} parent=5 // pred_region
        %s236 = ssub.s32 %s17, 1
        // Predicated region
        $region13: #{tpu_custom_call.1} parent=11 // pred_check
          %p237 = pneg %p64
        $region14: #{tpu_custom_call.1} parent=11 // pred_check_branch
          %239 = sbr.rel (%p237) target = $region16
        $region15: #{tpu_custom_call.1} parent=11 // pred_region
          %s240 = smul.u32 2, %s28
          %s241 = smul.u32 2, %s29
          %p242 = scmp.lt.s32.totalorder %s240, 1
          %s243 = scalar_select %p242, %s240, 1
          %p244 = scmp.lt.s32.totalorder %s241, 1
          %s245 = scalar_select %p244, %s241, 1
          %s246 = smul.addr %s243, 2
          %s247 = sadd.s32 %s245, %s246
          %s248 = smul.addr %s247, 4
          %s249 = scalar_lea.vmem %s0, %s248
          %s250 = smul.u32 2, %s28
          %s251 = smul.u32 2, %s29
        $region16: #{tpu_custom_call.1} parent=11 // pred_fallthru
          _
        // Predicated region
        $region17: #{tpu_custom_call.1} parent=11 // pred_check
          %p252 = pneg %p85
        $region18: #{tpu_custom_call.1} parent=11 // pred_check_branch
          %254 = sbr.rel (%p252) target = $region20
        $region19: #{tpu_custom_call.1} parent=11 // pred_region
          _
        $region20: #{tpu_custom_call.1} parent=11 // pred_fallthru
          _
        // Predicated region
        $region21: #{tpu_custom_call.1} parent=11 // pred_check
          %p255 = pneg %p106
        $region22: #{tpu_custom_call.1} parent=11 // pred_check_branch
          %257 = sbr.rel (%p255) target = $region24
        $region23: #{tpu_custom_call.1} parent=11 // pred_region
          _
        $region24: #{tpu_custom_call.1} parent=11 // pred_fallthru
          _
        // Predicated region
        $region25: #{tpu_custom_call.1} parent=11 // pred_check
          %p258 = pneg %p127
        $region26: #{tpu_custom_call.1} parent=11 // pred_check_branch
          %260 = sbr.rel (%p258) target = $region28
        $region27: #{tpu_custom_call.1} parent=11 // pred_region
          _
        $region28: #{tpu_custom_call.1} parent=11 // pred_fallthru
          _
        // Predicated region
        $region29: #{tpu_custom_call.1} parent=11 // pred_check
          %p261 = pneg %p148
        $region30: #{tpu_custom_call.1} parent=11 // pred_check_branch
          %263 = sbr.rel (%p261) target = $region32
        $region31: #{tpu_custom_call.1} parent=11 // pred_region
          _
        $region32: #{tpu_custom_call.1} parent=11 // pred_fallthru
          _
      $region12: #{tpu_custom_call.1} parent=5 // pred_fallthru
        _
      %p264 = scmp.lt.s32.totalorder %s17, 2
      // Predicated region
      $region33: #{tpu_custom_call.1} parent=5 // pred_check
        %p265 = pneg %p264
      $region34: #{tpu_custom_call.1} parent=5 // pred_check_branch
        %267 = sbr.rel (%p265) target = $region36
      $region35: #{tpu_custom_call.1} parent=5 // pred_region
        _
      $region36: #{tpu_custom_call.1} parent=5 // pred_fallthru
        _
      %p268 = scmp.le.s32.totalorder 1, %s17
      %p269 = scmp.lt.s32.totalorder %s17, 3
      %p270 = pnand %p268, %p269
      %p271 = pneg %p270
      // Predicated region
      $region37: #{tpu_custom_call.1} parent=5 // pred_check
        _
      $region38: #{tpu_custom_call.1} parent=5 // pred_check_branch
        %273 = sbr.rel (%p270) target = $region40
      $region39: #{tpu_custom_call.1} parent=5 // pred_region
        %s274 = ssub.s32 %s17, 1
        %s275 = smul.u32 2, %s28
        %s276 = smul.u32 2, %s29
        %p277 = scmp.lt.s32.totalorder %s275, 1
        %s278 = scalar_select %p277, %s275, 1
        %p279 = scmp.lt.s32.totalorder %s276, 1
        %s280 = scalar_select %p279, %s276, 1
        %s281 = smul.addr %s278, 2
        %s282 = sadd.s32 %s280, %s281
        %s283 = smul.addr %s282, 4
        %s284 = scalar_lea.vmem %s0, %s283
        %p285 = pneg %p64
        %p286 = pneg %p61
        %p287 = pneg %p85
        %p288 = pneg %p82
        %p289 = pneg %p106
        %p290 = pneg %p103
        %p291 = pneg %p127
        %p292 = pneg %p124
        %p293 = pneg %p148
        %p294 = pneg %p145
        %p295 = pneg %p180
        %p296 = pneg %p177
        %s297 = sand.u32 %s167, 1
        %s298 = scalar_lea.sflag [#allocation8], %s297
        %s299 = sand.u32 %s167, 1
        %s300 = smul.addr %s299, 16
        %s301 = scalar_lea.vmem [#allocation7], %s300
        %p302 = pneg %p201
        %p303 = pneg %p198
        %p304 = pneg %p222
        %p305 = pneg %p219
        %s306 = smul.u32 2, %s28
        %s307 = smul.u32 2, %s29
        %p308 = scmp.lt.s32.totalorder %s306, 1
        %s309 = scalar_select %p308, %s306, 1
        %p310 = scmp.lt.s32.totalorder %s307, 1
        %s311 = scalar_select %p310, %s307, 1
        %s312 = smul.addr %s309, 2
        %s313 = sadd.s32 %s311, %s312
        %s314 = smul.addr %s313, 4
        %s315 = scalar_lea.vmem %s0, %s314
        %s316 = smul.u32 2, %s28
        %s317 = smul.u32 2, %s29
        %s318 = smul.u32 %s27, %s28
        %s319 = smul.u32 %s27, %s29
        %s320 = smul.u32 2, %s318
        %s321 = smul.u32 2, %s319
        %p322 = scmp.eq.s32.totalorder %s28, 0
        %p323 = scmp.eq.s32.totalorder %s29, 0
        %p324 = pnand %p322, %p323
        %p325 = pneg %p324
        %p326 = scmp.eq.s32.totalorder %s27, 0
        // Predicated region
        $region41: #{tpu_custom_call.1} parent=39 // pred_check
          %p327 = pneg %p326
        $region42: #{tpu_custom_call.1} parent=39 // pred_check_branch
          %329 = sbr.rel (%p327) target = $region44
        $region43: #{tpu_custom_call.1} parent=39 // pred_region
          %v330 = vld [vmem:[%s315] sm:$0xff]
          %v331 = vld [vmem:[%s315 + $0x8] sm:$0xff]
          // Predicated region
          $region45: #{tpu_custom_call.1} parent=43 // pred_check
            _
          $region46: #{tpu_custom_call.1} parent=43 // pred_check_branch
            %333 = sbr.rel (%p324) target = $region48
          $region47: #{tpu_custom_call.1} parent=43 // pred_region
            %v336 = vcombine.high %v330, %v330
            %v337 = vcombine.high %v331, %v331
            %vm340 = vcmask 1043456
            %v341 = vsel %vm340, %v330, 0.0
            %v342 = vsel %vm340, %v336, 0.0
            %v343 = vadd.f32 %v341, %v342
            %344 = vadd.xlane.f32.xlu0 %v343
            %v345 = vpop.xlane.xlu0 %344
            %v346 = vsel %vm340, %v331, 0.0
            %v347 = vsel %vm340, %v337, 0.0
            %v348 = vadd.f32 %v346, %v347
            %349 = vadd.xlane.f32.xlu0 %v348
            %v350 = vpop.xlane.xlu0 %349
            %v351 = vsel %vm340, %v345, 0.0
            %v352 = vsel %vm340, %v350, 0.0
            %v353 = vadd.f32 %v351, %v352
            %v354 = vmul.f32 %v353, 0.001953125
            %vm355 = vcmask 3072
            %356 = vst.msk [vmem:[#allocation2] sm:$0xf] %vm355, %v354
            %357 = vst.msk [vmem:[#allocation3] sm:$0xf] %vm355, 0.0
            %358 = vst.msk [vmem:[#allocation4] sm:$0xf] %vm355, 0.0
          $region48: #{tpu_custom_call.1} parent=43 // pred_fallthru
            _
          %v359 = vld [vmem:[#allocation2] sm:$0xf]
          %361 = vset.pattern.permute.xlu0 0
          %362 = vperm.xlu0 %361, %v359
          %v363 = vpop.permute.xlu0 %362
          %v365 = vunpack.c.l.s4 839922192
          %v366 = vunpack.c.0.s8 %v365
          %v367 = vlaneseq
          %v368 = vshrl.u32 %v367, 7
          %v369 = vsub.s32 %v366, %v368
          %v370 = vrot.slane %v363, %v369
          %v372 = vsub.f32 %v330, %v370
          %v373 = vsub.f32 %v331, %v370
          %v374 = vld [vmem:[#allocation3] sm:$0xf]
          %v377 = vcombine.high %v372, %v372
          %v378 = vcombine.high %v373, %v373
          %vm381 = vcmask 1043456
          %v382 = vsel %vm381, %v372, 0.0
          %v383 = vsel %vm381, %v377, 0.0
          %v384 = vadd.f32 %v382, %v383
          %385 = vadd.xlane.f32.xlu0 %v384
          %v386 = vpop.xlane.xlu0 %385
          %v387 = vsel %vm381, %v373, 0.0
          %v388 = vsel %vm381, %v378, 0.0
          %v389 = vadd.f32 %v387, %v388
          %390 = vadd.xlane.f32.xlu0 %v389
          %v391 = vpop.xlane.xlu0 %390
          %v392 = vsel %vm381, %v386, 0.0
          %v393 = vsel %vm381, %v391, 0.0
          %v394 = vadd.f32 %v392, %v393
          %v395 = vadd.f32 %v374, %v394
          %vm396 = vcmask 3072
          %397 = vst.msk [vmem:[#allocation3] sm:$0xf] %vm396, %v395
          %v398 = vld [vmem:[#allocation4] sm:$0xf]
          %v399 = vmul.f32 %v372, %v372
          %v400 = vmul.f32 %v373, %v373
          %v403 = vcombine.high %v399, %v399
          %v404 = vcombine.high %v400, %v400
          %v407 = vsel %vm381, %v399, 0.0
          %v408 = vsel %vm381, %v403, 0.0
          %v409 = vadd.f32 %v407, %v408
          %410 = vadd.xlane.f32.xlu0 %v409
          %v411 = vpop.xlane.xlu0 %410
          %v412 = vsel %vm381, %v400, 0.0
          %v413 = vsel %vm381, %v404, 0.0
          %v414 = vadd.f32 %v412, %v413
          %415 = vadd.xlane.f32.xlu0 %v414
          %v416 = vpop.xlane.xlu0 %415
          %v417 = vsel %vm381, %v411, 0.0
          %v418 = vsel %vm381, %v416, 0.0
          %v419 = vadd.f32 %v417, %v418
          %v420 = vadd.f32 %v398, %v419
          %421 = vst.msk [vmem:[#allocation4] sm:$0xf] %vm396, %v420
          // Predicated region
          $region49: #{tpu_custom_call.1} parent=43 // pred_check
            _
          $region50: #{tpu_custom_call.1} parent=43 // pred_check_branch
            %423 = sbr.rel (%p324) target = $region52
          $region51: #{tpu_custom_call.1} parent=43 // pred_region
            %v424 = vld [vmem:[#allocation3] sm:$0xf]
            %v425 = vmul.f32 %v424, 0.001953125
            %v426 = vld [vmem:[#allocation2] sm:$0xf]
            %v427 = vadd.f32 %v426, %v425
            %v428 = vld [vmem:[#allocation4] sm:$0xf]
            %v429 = vmul.f32 %v428, 0.001953125
            %v430 = vmul.f32 %v425, %v425
            %v431 = vsub.f32 %v429, %v430
            %v432 = vmax.f32 %v431, 0.0
            %v433 = vadd.f32 %v432, 1e-05
            %v434 = vrsqrt.pop %v433
            %v435 = vld [vmem:[%s1] sm:$0xf]
            %v436 = vld [vmem:[%s2] sm:$0xf]
            %v437 = vmul.f32 %v435, %v434
            %438 = vst.msk [vmem:[#allocation5] sm:$0xf] %vm396, %v437
            %v439 = vmul.f32 %v427, %v435
            %v440 = vmul.f32 %v439, %v434
            %v441 = vsub.f32 %v436, %v440
            %442 = vst.msk [vmem:[#allocation6] sm:$0xf] %vm396, %v441
            %v443 = vld [vmem:[%s3] sm:$0xf]
            %v444 = vmul.f32 %v443, 0.9
            %v445 = vmul.f32 %v427, 0.1
            %v446 = vadd.f32 %v444, %v445
            %447 = vst.msk [vmem:[%s6] sm:$0xf] %vm396, %v446
            %v448 = vld [vmem:[%s4] sm:$0xf]
            %v449 = vmul.f32 %v448, 0.9
            %v450 = vmul.f32 %v432, 0.1
            %v451 = vadd.f32 %v449, %v450
            %452 = vst.msk [vmem:[%s7] sm:$0xf] %vm396, %v451
          $region52: #{tpu_custom_call.1} parent=43 // pred_fallthru
            _
        $region44: #{tpu_custom_call.1} parent=39 // pred_fallthru
          _
        %p453 = scmp.eq.s32.totalorder %s27, 1
        // Predicated region
        $region53: #{tpu_custom_call.1} parent=39 // pred_check
          %p454 = pneg %p453
        $region54: #{tpu_custom_call.1} parent=39 // pred_check_branch
          %456 = sbr.rel (%p454) target = $region56
        $region55: #{tpu_custom_call.1} parent=39 // pred_region
          %v457 = vld [vmem:[%s315] sm:$0xff]
          %v458 = vld [vmem:[%s315 + $0x8] sm:$0xff]
          %v459 = vld [vmem:[#allocation5] sm:$0xf]
          %461 = vset.pattern.permute.xlu0 0
          %462 = vperm.xlu0 %461, %v459
          %v463 = vpop.permute.xlu0 %462
          %v465 = vunpack.c.l.s4 839922192
          %v466 = vunpack.c.0.s8 %v465
          %v467 = vlaneseq
          %v468 = vshrl.u32 %v467, 7
          %v469 = vsub.s32 %v466, %v468
          %v470 = vrot.slane %v463, %v469
          %v472 = vmul.f32 %v457, %v470
          %v473 = vmul.f32 %v458, %v470
          %v474 = vld [vmem:[#allocation6] sm:$0xf]
          %476 = vset.pattern.permute.xlu0 0
          %477 = vperm.xlu0 %476, %v474
          %v478 = vpop.permute.xlu0 %477
          %v480 = vunpack.c.l.s4 839922192
          %v481 = vunpack.c.0.s8 %v480
          %v482 = vlaneseq
          %v483 = vshrl.u32 %v482, 7
          %v484 = vsub.s32 %v481, %v483
          %v485 = vrot.slane %v478, %v484
          %v487 = vadd.f32 %v472, %v485
          %v488 = vadd.f32 %v473, %v485
          %489 = vst [vmem:[%s301] sm:$0xff] %v487
          %490 = vst [vmem:[%s301 + $0x8] sm:$0xff] %v488
        $region56: #{tpu_custom_call.1} parent=39 // pred_fallthru
          _
        %s491 = sand.u32 %s167, 1
        %s492 = scalar_lea.sflag [#allocation8], %s491
        %s493 = sand.u32 %s167, 1
        %s494 = smul.addr %s493, 16
        %s495 = scalar_lea.vmem [#allocation7], %s494
        // Predicated region
        $region57: #{tpu_custom_call.1} parent=39 // pred_check
          %p496 = pneg %p177
        $region58: #{tpu_custom_call.1} parent=39 // pred_check_branch
          %498 = sbr.rel (%p496) target = $region60
        $region59: #{tpu_custom_call.1} parent=39 // pred_region
          %s499 = smul.u32 %s27, %s28
          %s500 = smul.u32 %s27, %s29
          %s501 = smul.u32 2, %s499
          %s502 = smul.u32 2, %s500
          %s504 = ssub.s32 256, 256
          %505 = vsyncadd %s492, %s504
          %s506 = smul.addr %s501, 2
          %s507 = sadd.s32 %s502, %s506
          %s508 = smul.addr %s507, 64
          %s509 = scalar_lea.hbm %s5, %s508
          %s510 = sshll.u32 %s495, 4
          %s511 = int_to_ptr.vmem [resolvable:$true] %s510
          %516 = dma.vmem_to_hbm [thread:$0]  %s511, 256, %s509, %s492, 128, 128, 8
        $region60: #{tpu_custom_call.1} parent=39 // pred_fallthru
          _
        // Predicated region
        $region61: #{tpu_custom_call.1} parent=39 // pred_check
          %p517 = pneg %p198
        $region62: #{tpu_custom_call.1} parent=39 // pred_check_branch
          %519 = sbr.rel (%p517) target = $region64
        $region63: #{tpu_custom_call.1} parent=39 // pred_region
          _
        $region64: #{tpu_custom_call.1} parent=39 // pred_fallthru
          _
        // Predicated region
        $region65: #{tpu_custom_call.1} parent=39 // pred_check
          %p520 = pneg %p219
        $region66: #{tpu_custom_call.1} parent=39 // pred_check_branch
          %522 = sbr.rel (%p520) target = $region68
        $region67: #{tpu_custom_call.1} parent=39 // pred_region
          _
        $region68: #{tpu_custom_call.1} parent=39 // pred_fallthru
          _
        // Predicated region
        $region69: #{tpu_custom_call.1} parent=39 // pred_check
          %p523 = pneg %p198
        $region70: #{tpu_custom_call.1} parent=39 // pred_check_branch
          %525 = sbr.rel (%p523) target = $region72
        $region71: #{tpu_custom_call.1} parent=39 // pred_region
          _
        $region72: #{tpu_custom_call.1} parent=39 // pred_fallthru
          _
        // Predicated region
        $region73: #{tpu_custom_call.1} parent=39 // pred_check
          %p526 = pneg %p219
        $region74: #{tpu_custom_call.1} parent=39 // pred_check_branch
          %528 = sbr.rel (%p526) target = $region76
        $region75: #{tpu_custom_call.1} parent=39 // pred_region
          _
        $region76: #{tpu_custom_call.1} parent=39 // pred_fallthru
          _
      $region40: #{tpu_custom_call.1} parent=5 // pred_fallthru
        _
      %p529 = scmp.le.s32.totalorder 2, %s17
      // Predicated region
      $region77: #{tpu_custom_call.1} parent=5 // pred_check
        %p530 = pneg %p529
      $region78: #{tpu_custom_call.1} parent=5 // pred_check_branch
        %532 = sbr.rel (%p530) target = $region80
      $region79: #{tpu_custom_call.1} parent=5 // pred_region
        %s533 = ssub.s32 %s17, 2
        // Predicated region
        $region81: #{tpu_custom_call.1} parent=79 // pred_check
          %p534 = pneg %p183
        $region82: #{tpu_custom_call.1} parent=79 // pred_check_branch
          %536 = sbr.rel (%p534) target = $region84
        $region83: #{tpu_custom_call.1} parent=79 // pred_region
          %s537 = sand.u32 %s168, 1
          %s538 = scalar_lea.sflag [#allocation8], %s537
          %s539 = sand.u32 %s168, 1
          %s540 = smul.addr %s539, 16
          %s541 = scalar_lea.vmem [#allocation7], %s540
          %542 = dma.done %s538, 256
        $region84: #{tpu_custom_call.1} parent=79 // pred_fallthru
          _
      $region80: #{tpu_custom_call.1} parent=5 // pred_fallthru
        _
    $region6: #{tpu_custom_call.1} parent=1 // loop_footer
      %s21 = sadd.s32 1, %s17
    $region7: #{tpu_custom_call.1} parent=1 // loop_footer_branch
      %16 = sbr.rel target = $region3
    $region8: #{tpu_custom_call.1} parent=1 // loop_exit
      _
    %543 = vsyncpa [#allocation8], 1
    %s544 = scalar_lea.sflag [#allocation8], 1
    %545 = vsyncpa %s544, 1

</llo_original>
